<compile_context>
chip_gen: v5e
topology: v5e:2x2
jax: 0.10.0
libtpu: 0.0.40
codegen_flags: <defaults>
</compile_context>

<pallas_src>
import jax
import jax.numpy as jnp
from jax import lax
from jax.experimental import pallas as pl
from jax.experimental.pallas import tpu as pltpu


def _make_adain_kernel(W: int, g: int):
    """Row-block kernel; g = number of original W-lines packed per (lane-dense) row."""
    gW = g * W
    inv_w = 1.0 / W
    inv_wm1 = 1.0 / (W - 1)           # unbiased (torch.std default); requires W >= 2

    def kernel(x_ref, s_ref, o_ref):
        # x_ref : (R, g*W)  g original (b, c, h) lines packed per row
        # s_ref : (R, g)    per-line linear output e[b, c]
        # o_ref : (R, g*W)
        x = x_ref[...].astype(jnp.float32)
        s = s_ref[...].astype(jnp.float32)

        if g == 1:
            # Plain per-row path (W already lane-dense multiple of 128, or unpackable W).
            mean = jnp.sum(x, axis=-1, keepdims=True) * inv_w
            xc = x - mean
            var = jnp.sum(xc * xc, axis=-1, keepdims=True) * inv_wm1
            scale = s / (jnp.sqrt(var) + 1e-5)                  # exact divide, (R, 1) only
            o_ref[...] = (x * scale).astype(o_ref.dtype)
            return

        # 0/1 segment matrices (1-2 vregs, rebuilt per step on the VPU; negligible).
        # red[i, j] = exp[j, i] = 1  iff packed element i belongs to line j.
        i_r = lax.broadcasted_iota(jnp.int32, (gW, g), 0)
        j_r = lax.broadcasted_iota(jnp.int32, (gW, g), 1)
        red = ((i_r >= j_r * W) & (i_r < (j_r + 1) * W)).astype(jnp.float32)   # (gW, g)
        j_e = lax.broadcasted_iota(jnp.int32, (g, gW), 0)
        i_e = lax.broadcasted_iota(jnp.int32, (g, gW), 1)
        exp = ((i_e >= j_e * W) & (i_e < (j_e + 1) * W)).astype(jnp.float32)   # (g, gW)

        # Two-pass moments (no catastrophic cancellation); segmented sums / broadcasts
        # ride the otherwise-idle MXU (free VLIW slot in this HBM-bound kernel).
        line_sum = jnp.dot(x, red, preferred_element_type=jnp.float32)         # (R, g)
        mean = line_sum * inv_w
        mean_e = jnp.dot(mean, exp, preferred_element_type=jnp.float32)        # (R, gW)
        xc = x - mean_e
        line_ss = jnp.dot(xc * xc, red, preferred_element_type=jnp.float32)    # (R, g)
        var = line_ss * inv_wm1
        # Exact per-line scale (only R*g divides), fusing linear output with 1/(std+eps).
        scale = s / (jnp.sqrt(var) + 1e-5)                                     # (R, g)
        scale_e = jnp.dot(scale, exp, preferred_element_type=jnp.float32)      # (R, gW)
        # NOTE: per torch semantics the output uses the *uncentered* x.
        o_ref[...] = (x * scale_e).astype(o_ref.dtype)

    return kernel


def adain_forward(x, emb, weight, bias, *, target_block_bytes=4 << 20):
    """AdaIN forward.

    x      : (B, C, H, W)  NCHW activations
    emb    : (B, F)        conditioning embedding
    weight : (C, F)        nn.Linear weight (torch layout: out_features x in_features)
    bias   : (C,)          nn.Linear bias
    """
    B, C, H, W = x.shape
    if W < 2:
        raise ValueError("torch.std(dim=-1, unbiased=True) requires W >= 2")

    # --- Tiny (B,F)@(F,C) linear hoisted out of the kernel (plain XLA). ---
    e = (emb.astype(jnp.float32) @ weight.astype(jnp.float32).T
         + bias.astype(jnp.float32))                                   # (B, C)

    rows = B * C * H                                                   # one (b, c, h) line per row

    # --- Lane packing: view g consecutive W-lines as one (g*W)-wide packed row. ---
    # Free row-major reshape of the same contiguous bytes; g*W == 128 when W | 128.
    if W % 128 == 0:
        g = 1
    elif 128 % W == 0:
        g = 128 // W                    # W | 128  =>  W and g are powers of two
        while rows % g:                 # keep packing a clean reshape of `rows`
            g //= 2
    else:
        g = 1                           # TODO(synk): general lane packing for W not dividing 128
    rows_p = rows // g
    width_p = g * W

    x_p = x.reshape(rows_p, width_p)
    # Packed per-line scale: scale_p[r, j] = e[b, c] of flat line index r*g + j.
    scale_p = jnp.broadcast_to(e[:, :, None], (B, C, H)).reshape(rows_p, g)

    # --- Row-block sizing from PADDED VMEM bytes (minor dims pad to 128 lanes). ---
    itemsize = jnp.dtype(x.dtype).itemsize
    x_row_vmem = pl.cdiv(width_p, 128) * 128 * itemsize                # one packed x row in VMEM
    s_row_vmem = 128 * 4                                               # (rblk, g) f32 scale row pads to 128 lanes
    row_vmem = 2 * x_row_vmem + s_row_vmem                             # x-in + out + scale, per row per buffer
    rblk = max(8, (target_block_bytes // row_vmem) // 8 * 8)
    rblk = min(rblk, rows_p)
    # Give the 1-D "parallel" grid enough steps for pipeline overlap / dual-TC sharding.
    min_steps = 8
    if rows_p >= min_steps * 8 and pl.cdiv(rows_p, rblk) < min_steps:
        rblk = max(8, (rows_p // min_steps) // 8 * 8)
    grid = (pl.cdiv(rows_p, rblk),)

    cost = pl.CostEstimate(
        flops=10 * rows * W,                      # moments + scale (incl. tiny MXU helpers)
        transcendentals=rows,                     # one sqrt per (b, c, h) line
        bytes_accessed=2 * rows * W * itemsize + rows * 4,
    )

    out_p = pl.pallas_call(
        _make_adain_kernel(W, g),
        out_shape=jax.ShapeDtypeStruct((rows_p, width_p), x.dtype),
        grid_spec=pl.GridSpec(
            grid=grid,
            in_specs=[
                pl.BlockSpec((rblk, width_p), lambda i: (i, 0)),       # packed x rows
                pl.BlockSpec((rblk, g), lambda i: (i, 0)),             # packed per-line scale
            ],
            out_specs=pl.BlockSpec((rblk, width_p), lambda i: (i, 0)),
        ),
        compiler_params=pltpu.CompilerParams(
            dimension_semantics=("parallel",),
            # Real footprint (double-buffered x in/out + scale + f32 temporaries) is a
            # few x target_block_bytes; 32 MiB leaves headroom on every generation
            # (v7x physical VMEM is only 64 MiB).
            vmem_limit_bytes=32 * 1024 * 1024,
        ),
        cost_estimate=cost,
    )(x_p, scale_p)

    return out_p.reshape(B, C, H, W)


def adain_reference(x, emb, weight, bias):
    """Pure-JAX reference with identical (torch) semantics, for verification."""
    e = emb.astype(jnp.float32) @ weight.astype(jnp.float32).T + bias.astype(jnp.float32)
    xf = x.astype(jnp.float32)
    std = jnp.std(xf, axis=-1, keepdims=True, ddof=1)                  # unbiased, like torch.std
    return ((xf / (std + 1e-5)) * e[:, :, None, None]).astype(x.dtype)


if __name__ == "__main__":
    key = jax.random.PRNGKey(0)

    def make_case(case_key, B, C, H, W, F):
        kx, ke, kw_, kb = jax.random.split(case_key, 4)
        x = jax.random.normal(kx, (B, C, H, W), dtype=jnp.float32)
        emb = jax.random.normal(ke, (B, F), dtype=jnp.float32)
        bound = 1.0 / (F ** 0.5)                                       # nn.Linear-style init, torch layout
        weight = jax.random.uniform(kw_, (C, F), minval=-bound, maxval=bound, dtype=jnp.float32)
        bias = jax.random.uniform(kb, (C,), minval=-bound, maxval=bound, dtype=jnp.float32)
        return x, emb, weight, bias

    cases = [
        # fully lane-packed (W=16 -> g=8, packed width 128), single block
        (dict(B=2, C=4, H=16, W=16, F=8), {}),
        # partial pack (rows=150 -> g=2) + small blocks -> multi-step grid with ragged tail
        (dict(B=3, C=5, H=10, W=16, F=8), dict(target_block_bytes=16 * 1024)),
        # already lane-dense (W == 128), plain per-row path (g=1)
        (dict(B=2, C=2, H=8, W=128, F=8), {}),
    ]

    for idx, (shapes, fwd_kwargs) in enumerate(cases):
        key, sub = jax.random.split(key)
        x, emb, weight, bias = make_case(sub, **shapes)
        out = adain_forward(x, emb, weight, bias, **fwd_kwargs)
        out = jax.block_until_ready(out)
        ref = adain_reference(x, emb, weight, bias)
        assert out.shape == x.shape
        assert jnp.allclose(out, ref, atol=5e-3, rtol=5e-3), f"mismatch vs reference (case {idx})"

    print("KERNEL_OK")
</pallas_src>

<mosaic_0001>
module attributes {stable_mosaic.version = 11 : i64} {
  func.func @kernel(%arg0: i32, %arg1: memref<16x128xf32, #tpu.memory_space<vmem>>, %arg2: memref<16x8xf32, #tpu.memory_space<vmem>>, %arg3: memref<16x128xf32, #tpu.memory_space<vmem>>) attributes {dimension_semantics = [#tpu.dimension_semantics<parallel>], iteration_bounds = array<i64: 1>, scalar_prefetch = 0 : i64, scratch_operands = 0 : i64, tpu.core_type = #tpu.core_type<tc>, window_params = [{transform_indices = @transform_0, window_bounds = array<i64: 16, 128>}, {transform_indices = @transform_1, window_bounds = array<i64: 16, 8>}, {transform_indices = @transform_2, window_bounds = array<i64: 16, 128>}]} {
    %c0 = arith.constant 0 : index
    %c0_0 = arith.constant 0 : index
    %0 = vector.load %arg1[%c0, %c0_0] : memref<16x128xf32, #tpu.memory_space<vmem>>, vector<16x128xf32>
    %c0_1 = arith.constant 0 : index
    %c0_2 = arith.constant 0 : index
    %1 = vector.load %arg2[%c0_1, %c0_2] : memref<16x8xf32, #tpu.memory_space<vmem>>, vector<16x8xf32>
    %2 = tpu.iota {dimensions = array<i32: 0>} : vector<128x8xi32>
    %3 = tpu.iota {dimensions = array<i32: 1>} : vector<128x8xi32>
    %c16_i32 = arith.constant 16 : i32
    %4 = vector.broadcast %c16_i32 : i32 to vector<128x8xi32>
    %5 = arith.muli %3, %4 : vector<128x8xi32>
    %6 = arith.cmpi sge, %2, %5 : vector<128x8xi32>
    %c1_i32 = arith.constant 1 : i32
    %7 = vector.broadcast %c1_i32 : i32 to vector<128x8xi32>
    %8 = arith.addi %3, %7 : vector<128x8xi32>
    %c16_i32_3 = arith.constant 16 : i32
    %9 = vector.broadcast %c16_i32_3 : i32 to vector<128x8xi32>
    %10 = arith.muli %8, %9 : vector<128x8xi32>
    %11 = arith.cmpi slt, %2, %10 : vector<128x8xi32>
    %12 = arith.andi %6, %11 : vector<128x8xi1>
    %13 = arith.extui %12 : vector<128x8xi1> to vector<128x8xi32>
    %14 = arith.sitofp %13 : vector<128x8xi32> to vector<128x8xf32>
    %15 = tpu.iota {dimensions = array<i32: 0>} : vector<8x128xi32>
    %16 = tpu.iota {dimensions = array<i32: 1>} : vector<8x128xi32>
    %c16_i32_4 = arith.constant 16 : i32
    %17 = vector.broadcast %c16_i32_4 : i32 to vector<8x128xi32>
    %18 = arith.muli %15, %17 : vector<8x128xi32>
    %19 = arith.cmpi sge, %16, %18 : vector<8x128xi32>
    %c1_i32_5 = arith.constant 1 : i32
    %20 = vector.broadcast %c1_i32_5 : i32 to vector<8x128xi32>
    %21 = arith.addi %15, %20 : vector<8x128xi32>
    %c16_i32_6 = arith.constant 16 : i32
    %22 = vector.broadcast %c16_i32_6 : i32 to vector<8x128xi32>
    %23 = arith.muli %21, %22 : vector<8x128xi32>
    %24 = arith.cmpi slt, %16, %23 : vector<8x128xi32>
    %25 = arith.andi %19, %24 : vector<8x128xi1>
    %26 = arith.extui %25 : vector<8x128xi1> to vector<8x128xi32>
    %27 = arith.sitofp %26 : vector<8x128xi32> to vector<8x128xf32>
    %cst = arith.constant dense<0.000000e+00> : vector<16x8xf32>
    %28 = tpu.matmul %0, %14, %cst {dimension_numbers = #tpu.dot_dimension_numbers<[1], [0], [0], [1], [0, 0, 1, 1], [], []>} : vector<16x128xf32>, vector<128x8xf32>, vector<16x8xf32> -> vector<16x8xf32>
    %cst_7 = arith.constant 6.250000e-02 : f32
    %29 = vector.broadcast %cst_7 : f32 to vector<16x8xf32>
    %30 = arith.mulf %28, %29 : vector<16x8xf32>
    %cst_8 = arith.constant dense<0.000000e+00> : vector<16x128xf32>
    %31 = tpu.matmul %30, %27, %cst_8 {dimension_numbers = #tpu.dot_dimension_numbers<[1], [0], [0], [1], [0, 0, 1, 1], [], []>} : vector<16x8xf32>, vector<8x128xf32>, vector<16x128xf32> -> vector<16x128xf32>
    %32 = arith.subf %0, %31 : vector<16x128xf32>
    %33 = arith.mulf %32, %32 : vector<16x128xf32>
    %cst_9 = arith.constant dense<0.000000e+00> : vector<16x8xf32>
    %34 = tpu.matmul %33, %14, %cst_9 {dimension_numbers = #tpu.dot_dimension_numbers<[1], [0], [0], [1], [0, 0, 1, 1], [], []>} : vector<16x128xf32>, vector<128x8xf32>, vector<16x8xf32> -> vector<16x8xf32>
    %cst_10 = arith.constant 0.0666666701 : f32
    %35 = vector.broadcast %cst_10 : f32 to vector<16x8xf32>
    %36 = arith.mulf %34, %35 : vector<16x8xf32>
    %37 = math.sqrt %36 : vector<16x8xf32>
    %cst_11 = arith.constant 9.99999974E-6 : f32
    %38 = vector.broadcast %cst_11 : f32 to vector<16x8xf32>
    %39 = arith.addf %37, %38 : vector<16x8xf32>
    %40 = arith.divf %1, %39 : vector<16x8xf32>
    %cst_12 = arith.constant dense<0.000000e+00> : vector<16x128xf32>
    %41 = tpu.matmul %40, %27, %cst_12 {dimension_numbers = #tpu.dot_dimension_numbers<[1], [0], [0], [1], [0, 0, 1, 1], [], []>} : vector<16x8xf32>, vector<8x128xf32>, vector<16x128xf32> -> vector<16x128xf32>
    %42 = arith.mulf %0, %41 : vector<16x128xf32>
    %c0_13 = arith.constant 0 : index
    %c0_14 = arith.constant 0 : index
    %43 = vector.load %arg3[%c0_13, %c0_14] : memref<16x128xf32, #tpu.memory_space<vmem>>, vector<16x128xf32>
    tpu.vector_store %arg3[%c0_13, %c0_14], %42 {strides = array<i32>} : memref<16x128xf32, #tpu.memory_space<vmem>>, vector<16x128xf32>,
    return
  }
  func.func @transform_0(%arg0: i32) -> (i32, i32) {
    %c0_i32 = arith.constant 0 : i32
    %c0_i32_0 = arith.constant 0 : i32
    return %arg0, %c0_i32 : i32, i32
  }
  func.func @transform_1(%arg0: i32) -> (i32, i32) {
    %c0_i32 = arith.constant 0 : i32
    %c0_i32_0 = arith.constant 0 : i32
    return %arg0, %c0_i32 : i32, i32
  }
  func.func @transform_2(%arg0: i32) -> (i32, i32) {
    %c0_i32 = arith.constant 0 : i32
    %c0_i32_0 = arith.constant 0 : i32
    return %arg0, %c0_i32 : i32, i32
  }
}

</mosaic_0001>

<llo_original>
// kernel: tpu_custom_call.1
$region0: #{tpu_custom_call.1}
  #allocation0 [shape = 'u32[]', space=smem, size = 0x4, offset = 0x4, fixed_abs, tag = 'smem constant byte address 0x4 - core index']
  #allocation1 [shape = 'u32[72,128]{1,0:T(1,128)}', space=vmem, size = 0x9000, scoped, tag = 'internal scratch']
  %s0 = inlined_call_operand.vmem [shape: f32[16,128], index: 0, kind: input, shape index: {}]
  %s1 = inlined_call_operand.vmem [shape: f32[16,8], index: 1, kind: input, shape index: {}]
  %s2 = inlined_call_operand.hbm [shape: f32[16,128], index: 2, kind: output, shape index: {}]
  %s3 = sld [smem:[#allocation0]]
  $region18: #{tpu_custom_call.1} parent=0
    _
  %s5 = ssub.s32 1, %s3
  %s6 = scalar_select 0, %s5, %s3
  $region1: #{tpu_custom_call.1} parent=0
    #allocation2 [shape = 'u8[8192]{0}', space=vmem, size = 0x2000, scoped, tag = 'output window, operand 0, single buffered']
    #allocation3 [shape = 's32[1]{0}', space=sflag, size = 0x4, scoped, tag = 'scoped memory for tpu_custom_call.1']
    %7 = vsyncpa [#allocation3], 0
    // Predicated region
    $region2: #{tpu_custom_call.1} parent=1 // pred_check
      _
    $region3: #{tpu_custom_call.1} parent=1 // pred_check_branch
      %9 = sbr.rel (0) target = $region5
    $region4: #{tpu_custom_call.1} parent=1 // pred_region
      _
    $region5: #{tpu_custom_call.1} parent=1 // pred_fallthru
      _
    // Predicated region
    $region6: #{tpu_custom_call.1} parent=1 // pred_check
      _
    $region7: #{tpu_custom_call.1} parent=1 // pred_check_branch
      %11 = sbr.rel (0) target = $region9
    $region8: #{tpu_custom_call.1} parent=1 // pred_region
      _
    $region9: #{tpu_custom_call.1} parent=1 // pred_fallthru
      _
    %v12 = vld [vmem:[%s0] sm:$0xff]
    %v13 = vld [vmem:[%s0 + $0x8] sm:$0xff]
    %v14 = vld [vmem:[%s1] sm:$0xff]
    %v15 = vld [vmem:[%s1 + $0x8] sm:$0xff]
    %v16 = vlaneseq
    %v17 = vshrl.u32 %v16, 7
    %v18 = vadd.s32 %v17, 8
    %v19 = vadd.s32 %v17, 16
    %v20 = vadd.s32 %v17, 24
    %v21 = vadd.s32 %v17, 32
    %v22 = vadd.s32 %v17, 40
    %v23 = vadd.s32 %v17, 48
    %v24 = vadd.s32 %v17, 56
    %v25 = vadd.s32 %v17, 64
    %v26 = vadd.s32 %v17, 72
    %v27 = vadd.s32 %v17, 80
    %v28 = vadd.s32 %v17, 88
    %v29 = vadd.s32 %v17, 96
    %v30 = vadd.s32 %v17, 104
    %v31 = vadd.s32 %v17, 112
    %v32 = vadd.s32 %v17, 120
    %v33 = vlaneseq
    %v34 = vand.u32 %v33, 127
    %v35 = vmul.u32 %v34, 16
    %vm36 = vcmp.ge.s32.totalorder %v17, %v35
    %vm37 = vcmp.ge.s32.totalorder %v18, %v35
    %vm38 = vcmp.ge.s32.totalorder %v19, %v35
    %vm39 = vcmp.ge.s32.totalorder %v20, %v35
    %vm40 = vcmp.ge.s32.totalorder %v21, %v35
    %vm41 = vcmp.ge.s32.totalorder %v22, %v35
    %vm42 = vcmp.ge.s32.totalorder %v23, %v35
    %vm43 = vcmp.ge.s32.totalorder %v24, %v35
    %vm44 = vcmp.ge.s32.totalorder %v25, %v35
    %vm45 = vcmp.ge.s32.totalorder %v26, %v35
    %vm46 = vcmp.ge.s32.totalorder %v27, %v35
    %vm47 = vcmp.ge.s32.totalorder %v28, %v35
    %vm48 = vcmp.ge.s32.totalorder %v29, %v35
    %vm49 = vcmp.ge.s32.totalorder %v30, %v35
    %vm50 = vcmp.ge.s32.totalorder %v31, %v35
    %vm51 = vcmp.ge.s32.totalorder %v32, %v35
    %v52 = vadd.s32 %v34, 1
    %v53 = vmul.u32 %v52, 16
    %vm54 = vcmp.lt.s32.totalorder %v17, %v53
    %vm55 = vcmp.lt.s32.totalorder %v18, %v53
    %vm56 = vcmp.lt.s32.totalorder %v19, %v53
    %vm57 = vcmp.lt.s32.totalorder %v20, %v53
    %vm58 = vcmp.lt.s32.totalorder %v21, %v53
    %vm59 = vcmp.lt.s32.totalorder %v22, %v53
    %vm60 = vcmp.lt.s32.totalorder %v23, %v53
    %vm61 = vcmp.lt.s32.totalorder %v24, %v53
    %vm62 = vcmp.lt.s32.totalorder %v25, %v53
    %vm63 = vcmp.lt.s32.totalorder %v26, %v53
    %vm64 = vcmp.lt.s32.totalorder %v27, %v53
    %vm65 = vcmp.lt.s32.totalorder %v28, %v53
    %vm66 = vcmp.lt.s32.totalorder %v29, %v53
    %vm67 = vcmp.lt.s32.totalorder %v30, %v53
    %vm68 = vcmp.lt.s32.totalorder %v31, %v53
    %vm69 = vcmp.lt.s32.totalorder %v32, %v53
    %vm70 = vmand %vm36, %vm54
    %vm71 = vmand %vm37, %vm55
    %vm72 = vmand %vm38, %vm56
    %vm73 = vmand %vm39, %vm57
    %vm74 = vmand %vm40, %vm58
    %vm75 = vmand %vm41, %vm59
    %vm76 = vmand %vm42, %vm60
    %vm77 = vmand %vm43, %vm61
    %vm78 = vmand %vm44, %vm62
    %vm79 = vmand %vm45, %vm63
    %vm80 = vmand %vm46, %vm64
    %vm81 = vmand %vm47, %vm65
    %vm82 = vmand %vm48, %vm66
    %vm83 = vmand %vm49, %vm67
    %vm84 = vmand %vm50, %vm68
    %vm85 = vmand %vm51, %vm69
    %v86 = vsel %vm70, 1, 0
    %v87 = vsel %vm71, 1, 0
    %v88 = vsel %vm72, 1, 0
    %v89 = vsel %vm73, 1, 0
    %v90 = vsel %vm74, 1, 0
    %v91 = vsel %vm75, 1, 0
    %v92 = vsel %vm76, 1, 0
    %v93 = vsel %vm77, 1, 0
    %v94 = vsel %vm78, 1, 0
    %v95 = vsel %vm79, 1, 0
    %v96 = vsel %vm80, 1, 0
    %v97 = vsel %vm81, 1, 0
    %v98 = vsel %vm82, 1, 0
    %v99 = vsel %vm83, 1, 0
    %v100 = vsel %vm84, 1, 0
    %v101 = vsel %vm85, 1, 0
    %v102 = vcvt.s32.f32 %v86
    %v103 = vcvt.s32.f32 %v87
    %v104 = vcvt.s32.f32 %v88
    %v105 = vcvt.s32.f32 %v89
    %v106 = vcvt.s32.f32 %v90
    %v107 = vcvt.s32.f32 %v91
    %v108 = vcvt.s32.f32 %v92
    %v109 = vcvt.s32.f32 %v93
    %v110 = vcvt.s32.f32 %v94
    %v111 = vcvt.s32.f32 %v95
    %v112 = vcvt.s32.f32 %v96
    %v113 = vcvt.s32.f32 %v97
    %v114 = vcvt.s32.f32 %v98
    %v115 = vcvt.s32.f32 %v99
    %v116 = vcvt.s32.f32 %v100
    %v117 = vcvt.s32.f32 %v101
    %v118 = vmul.u32 %v17, 16
    %vm119 = vcmp.ge.s32.totalorder %v34, %v118
    %v120 = vadd.s32 %v17, 1
    %v121 = vmul.u32 %v120, 16
    %vm122 = vcmp.lt.s32.totalorder %v34, %v121
    %vm123 = vmand %vm119, %vm122
    %v124 = vsel %vm123, 1, 0
    %v125 = vcvt.s32.f32 %v124
    %126 = vmatpush.msra.mxu0 %v117
    %127 = vmatpush.msra.mxu0 %v116
    %128 = vmatpush.msra.mxu0 %v115
    %129 = vmatpush.msra.mxu0 %v114
    %130 = vmatpush.msra.mxu0 %v113
    %131 = vmatpush.msra.mxu0 %v112
    %132 = vmatpush.msra.mxu0 %v111
    %133 = vmatpush.msra.mxu0 %v110
    %134 = vmatpush.msra.mxu0 %v109
    %135 = vmatpush.msra.mxu0 %v108
    %136 = vmatpush.msra.mxu0 %v107
    %137 = vmatpush.msra.mxu0 %v106
    %138 = vmatpush.msra.mxu0 %v105
    %139 = vmatpush.msra.mxu0 %v104
    %140 = vmatpush.msra.mxu0 %v103
    %141 = vmatpush.msra.mxu0 %v102
    %142 = vmatmul.f32.gmra.mxu0 %v12
    %v143 = vpop.f32.mrf.mxu0
    %v144 = vadd.f32 0.0, %v143
    %145 = vmatmul.f32.gmra.mxu0 %v13
    %v146 = vpop.f32.mrf.mxu0
    %v147 = vadd.f32 0.0, %v146
    %148 = vdwg.mxu0
    %v149 = vmul.f32 %v144, 0.0625
    %v150 = vmul.f32 %v147, 0.0625
    %vm151 = vcmask 64512
    %v153 = vsel %vm151, %v149, 0
    %v156 = vsel %vm151, %v150, 0
    %158 = vmatpush.msra.mxu0 0.0
    %159 = vmatpush.msra.mxu0 0.0
    %160 = vmatpush.msra.mxu0 0.0
    %161 = vmatpush.msra.mxu0 0.0
    %162 = vmatpush.msra.mxu0 0.0
    %163 = vmatpush.msra.mxu0 0.0
    %164 = vmatpush.msra.mxu0 0.0
    %165 = vmatpush.msra.mxu0 0.0
    %166 = vmatpush.msra.mxu0 0.0
    %167 = vmatpush.msra.mxu0 0.0
    %168 = vmatpush.msra.mxu0 0.0
    %169 = vmatpush.msra.mxu0 0.0
    %170 = vmatpush.msra.mxu0 0.0
    %171 = vmatpush.msra.mxu0 0.0
    %172 = vmatpush.msra.mxu0 0.0
    %173 = vmatpush.msra.mxu0 %v125
    %174 = vmatmul.f32.gmra.mxu0 %v153
    %v175 = vpop.f32.mrf.mxu0
    %v176 = vadd.f32 0.0, %v175
    %177 = vmatmul.f32.gmra.mxu0 %v156
    %v178 = vpop.f32.mrf.mxu0
    %v179 = vadd.f32 0.0, %v178
    %180 = vdwg.mxu0
    %v181 = vsub.f32 %v12, %v176
    %v182 = vsub.f32 %v13, %v179
    %v183 = vmul.f32 %v181, %v181
    %v184 = vmul.f32 %v182, %v182
    %185 = vmatpush.msra.mxu0 %v117
    %186 = vmatpush.msra.mxu0 %v116
    %187 = vmatpush.msra.mxu0 %v115
    %188 = vmatpush.msra.mxu0 %v114
    %189 = vmatpush.msra.mxu0 %v113
    %190 = vmatpush.msra.mxu0 %v112
    %191 = vmatpush.msra.mxu0 %v111
    %192 = vmatpush.msra.mxu0 %v110
    %193 = vmatpush.msra.mxu0 %v109
    %194 = vmatpush.msra.mxu0 %v108
    %195 = vmatpush.msra.mxu0 %v107
    %196 = vmatpush.msra.mxu0 %v106
    %197 = vmatpush.msra.mxu0 %v105
    %198 = vmatpush.msra.mxu0 %v104
    %199 = vmatpush.msra.mxu0 %v103
    %200 = vmatpush.msra.mxu0 %v102
    %201 = vmatmul.f32.gmra.mxu0 %v183
    %v202 = vpop.f32.mrf.mxu0
    %v203 = vadd.f32 0.0, %v202
    %204 = vmatmul.f32.gmra.mxu0 %v184
    %v205 = vpop.f32.mrf.mxu0
    %v206 = vadd.f32 0.0, %v205
    %207 = vdwg.mxu0
    %v208 = vmul.f32 %v203, 0.06666667
    %v209 = vmul.f32 %v206, 0.06666667
    %v210 = vrsqrt.pop %v208
    %v211 = vmul.f32 %v210, %v208
    %v212 = vmul.f32 %v211, %v210
    %v213 = vmul.f32 0.5, %v212
    %v214 = vsub.f32 1.5, %v213
    %v215 = vmul.f32 %v210, %v214
    %v216 = vmul.f32 %v208, %v215
    %vm217 = vcmp.eq.f32.partialorder %v208, inf
    %v218 = vsel %vm217, %v208, %v216
    %vm219 = vcmp.eq.f32.partialorder %v208, 0.0
    %v220 = vand.u32 %v208, 2147483648
    %v221 = vsel %vm219, %v220, %v218
    %v222 = vrsqrt.pop %v209
    %v223 = vmul.f32 %v222, %v209
    %v224 = vmul.f32 %v223, %v222
    %v225 = vmul.f32 0.5, %v224
    %v226 = vsub.f32 1.5, %v225
    %v227 = vmul.f32 %v222, %v226
    %v228 = vmul.f32 %v209, %v227
    %vm229 = vcmp.eq.f32.partialorder %v209, inf
    %v230 = vsel %vm229, %v209, %v228
    %vm231 = vcmp.eq.f32.partialorder %v209, 0.0
    %v232 = vand.u32 %v209, 2147483648
    %v233 = vsel %vm231, %v232, %v230
    %v234 = vadd.f32 %v221, 1e-05
    %v235 = vadd.f32 %v233, 1e-05
    %v236 = vrcp.pop %v234
    %v237 = vmul.f32 %v234, %v236
    %v238 = vsub.f32 1.0, %v237
    %v239 = vmul.f32 %v236, %v238
    %v240 = vadd.f32 %v236, %v239
    %vm241 = vweird.f32 %v234
    %vm242 = vweird.f32 %v236
    %vm243 = vmor %vm241, %vm242
    %v244 = vsel %vm243, %v236, %v240
    %v245 = vand.u32 2147483647, %v234
    %vm246 = vcmp.eq.f32.partialorder %v245, 8.507059e+37
    %v247 = vand.u32 %v234, 2147483648
    %v248 = vor.u32 1.1754944e-38, %v247
    %v249 = vsel %vm246, %v248, %v244
    %v250 = vmul.f32 %v14, %v249
    %v251 = vrcp.pop %v235
    %v252 = vmul.f32 %v235, %v251
    %v253 = vsub.f32 1.0, %v252
    %v254 = vmul.f32 %v251, %v253
    %v255 = vadd.f32 %v251, %v254
    %vm256 = vweird.f32 %v235
    %vm257 = vweird.f32 %v251
    %vm258 = vmor %vm256, %vm257
    %v259 = vsel %vm258, %v251, %v255
    %v260 = vand.u32 2147483647, %v235
    %vm261 = vcmp.eq.f32.partialorder %v260, 8.507059e+37
    %v262 = vand.u32 %v235, 2147483648
    %v263 = vor.u32 1.1754944e-38, %v262
    %v264 = vsel %vm261, %v263, %v259
    %v265 = vmul.f32 %v15, %v264
    %v267 = vsel %vm151, %v250, 0
    %v270 = vsel %vm151, %v265, 0
    %272 = vmatpush.msra.mxu0 0.0
    %273 = vmatpush.msra.mxu0 0.0
    %274 = vmatpush.msra.mxu0 0.0
    %275 = vmatpush.msra.mxu0 0.0
    %276 = vmatpush.msra.mxu0 0.0
    %277 = vmatpush.msra.mxu0 0.0
    %278 = vmatpush.msra.mxu0 0.0
    %279 = vmatpush.msra.mxu0 0.0
    %280 = vmatpush.msra.mxu0 0.0
    %281 = vmatpush.msra.mxu0 0.0
    %282 = vmatpush.msra.mxu0 0.0
    %283 = vmatpush.msra.mxu0 0.0
    %284 = vmatpush.msra.mxu0 0.0
    %285 = vmatpush.msra.mxu0 0.0
    %286 = vmatpush.msra.mxu0 0.0
    %287 = vmatpush.msra.mxu0 %v125
    %288 = vmatmul.f32.gmra.mxu0 %v267
    %v289 = vpop.f32.mrf.mxu0
    %v290 = vadd.f32 0.0, %v289
    %291 = vmatmul.f32.gmra.mxu0 %v270
    %v292 = vpop.f32.mrf.mxu0
    %v293 = vadd.f32 0.0, %v292
    %294 = vdwg.mxu0
    %v295 = vmul.f32 %v12, %v290
    %v296 = vmul.f32 %v13, %v293
    %297 = vst [vmem:[#allocation2] sm:$0xff] %v295
    %298 = vst [vmem:[#allocation2 + $0x8] sm:$0xff] %v296
    // Predicated region
    $region10: #{tpu_custom_call.1} parent=1 // pred_check
      _
    $region11: #{tpu_custom_call.1} parent=1 // pred_check_branch
      %300 = sbr.rel (0) target = $region13
    $region12: #{tpu_custom_call.1} parent=1 // pred_region
      %302 = vsyncadd [#allocation3], 0
      %s303 = sshll.u32 [#allocation2], 4
      %s304 = int_to_ptr.vmem [resolvable:$true] %s303
      %s305 = sshll.u32 %s2, 4
      %s306 = int_to_ptr.hbm [resolvable:$true] %s305
      %311 = dma.vmem_to_hbm [thread:$0]  %s304, 256, %s306, [#allocation3], 128, 128, 8
    $region13: #{tpu_custom_call.1} parent=1 // pred_fallthru
      _
    // Predicated region
    $region14: #{tpu_custom_call.1} parent=1 // pred_check
      _
    $region15: #{tpu_custom_call.1} parent=1 // pred_check_branch
      %313 = sbr.rel (0) target = $region17
    $region16: #{tpu_custom_call.1} parent=1 // pred_region
      %315 = dma.done [#allocation3], 256
    $region17: #{tpu_custom_call.1} parent=1 // pred_fallthru
      _
    %316 = vsyncpa [#allocation3], 1

</llo_original>
